<compile_context>
chip_gen: v6e
topology: v6e:2x2x1
jax: 0.10.0
libtpu: 0.0.40
codegen_flags: <defaults>
</compile_context>

<pallas_src>
import jax
import jax.numpy as jnp
from jax import lax
from jax.experimental import pallas as pl
from jax.experimental.pallas import tpu as pltpu

IN_DIM = 3        # affine1 in_features
HID_DIM = 128     # affine1 out_features / affine2 in_features
OUT_DIM = 2       # affine2 out_features
PAD_IN = 8        # x lane padding (narrow slab; last block dim == full dim)
PAD_OUT = 8       # output lane padding
TM_MAX = 4096     # batch tile rows: 4096*8*4B = 128 KiB per buffer, tiny VMEM


def _round_up(n, m):
    return ((n + m - 1) // m) * m


def _choose_tiles(B):
    """Pick (TM, Bp): batch tile and padded batch size with Bp % TM == 0."""
    Bp = _round_up(B, 8)
    if Bp <= 16:
        return Bp, Bp
    # Target >= 2 grid steps so the 'parallel' batch axis can shard across
    # both v7x TensorCores; cap the tile at TM_MAX rows.
    TM = min(TM_MAX, _round_up(pl.cdiv(Bp, 2), 8))
    Bp = _round_up(Bp, TM)
    return TM, Bp


def _policy_kernel(x_ref, w1_ref, b1_ref, w2_ref, b2_ref, o_ref):
    """One batch tile, fully VMEM-resident.

    x_ref : (TM, 8)    f32  zero-padded inputs (first 3 cols valid)
    w1_ref: (8, 128)   f32  zero-padded W1^T   (first 3 rows valid)
    b1_ref: (1, 128)   f32
    w2_ref: (128, 8)   bf16 zero-padded W2^T   (first 2 cols valid)
    b2_ref: (1, 8)     f32  zero-padded b2
    o_ref : (TM, 8)    f32  softmax probs in cols 0..1, zeros elsewhere
    """
    x = x_ref[...]
    w1 = w1_ref[...]

    # ---- layer 1 on the VPU: K=3 is far too shallow to be worth MXU cadence
    h = (b1_ref[...]
         + x[:, 0:1] * w1[0:1, :]
         + x[:, 1:2] * w1[1:2, :]
         + x[:, 2:3] * w1[2:3, :])
    h = jnp.maximum(h, 0.0)

    # ---- layer 2 on the MXU: bf16 inputs, f32 accumulation ----------------
    s = jnp.dot(h.astype(jnp.bfloat16), w2_ref[...],
                preferred_element_type=jnp.float32) + b2_ref[...]   # (TM, 8)

    # ---- 2-class softmax == sigmoid of the logit difference ---------------
    # p0 = 1/(1+exp(s1-s0)), p1 = 1-p0: one EUP exp, no cross-lane reductions,
    # and the two probabilities sum to 1 exactly.
    d = s[:, 1:2] - s[:, 0:1]                      # (TM, 1)
    p0 = 1.0 / (1.0 + jnp.exp(d))
    p1 = 1.0 - p0
    col = lax.broadcasted_iota(jnp.int32, s.shape, 1)
    o_ref[...] = jnp.where(col == 0, p0, jnp.where(col == 1, p1, 0.0))


def prepare_params(w1, b1, w2, b2):
    """Pad/transpose the PyTorch-layout parameters once, outside the hot path.

    w1: (128, 3), b1: (128,), w2: (2, 128), b2: (2,)
    (PyTorch nn.Linear weight layout: (out_features, in_features)).
    """
    w1_pad = jnp.zeros((PAD_IN, HID_DIM), jnp.float32).at[:IN_DIM, :].set(
        jnp.asarray(w1, jnp.float32).T)
    b1_pad = jnp.asarray(b1, jnp.float32).reshape(1, HID_DIM)
    w2_pad = jnp.zeros((HID_DIM, PAD_OUT), jnp.float32).at[:, :OUT_DIM].set(
        jnp.asarray(w2, jnp.float32).T).astype(jnp.bfloat16)
    b2_pad = jnp.zeros((1, PAD_OUT), jnp.float32).at[0, :OUT_DIM].set(
        jnp.asarray(b2, jnp.float32))
    return w1_pad, b1_pad, w2_pad, b2_pad


@jax.jit
def policy_forward(x, w1_pad, b1_pad, w2_pad, b2_pad):
    """x: (B, 3) float32; padded params from prepare_params().
    Returns (B, 2) softmax probabilities."""
    B = x.shape[0]
    TM, Bp = _choose_tiles(B)

    # Only per-call glue left: pad the batch/lane dims of x (one cheap op).
    x_pad = jnp.pad(x.astype(jnp.float32), ((0, Bp - B), (0, PAD_IN - IN_DIM)))

    grid = (Bp // TM,)
    out_pad = pl.pallas_call(
        _policy_kernel,
        out_shape=jax.ShapeDtypeStruct((Bp, PAD_OUT), jnp.float32),
        grid=grid,
        in_specs=[
            pl.BlockSpec((TM, PAD_IN), lambda i: (i, 0)),        # x: streamed
            pl.BlockSpec((PAD_IN, HID_DIM), lambda i: (0, 0)),   # W1: resident
            pl.BlockSpec((1, HID_DIM), lambda i: (0, 0)),        # b1: resident
            pl.BlockSpec((HID_DIM, PAD_OUT), lambda i: (0, 0)),  # W2: resident
            pl.BlockSpec((1, PAD_OUT), lambda i: (0, 0)),        # b2: resident
        ],
        out_specs=pl.BlockSpec((TM, PAD_OUT), lambda i: (i, 0)),
        compiler_params=pltpu.CompilerParams(
            dimension_semantics=("parallel",)),
    )(x_pad, w1_pad, b1_pad, w2_pad, b2_pad)

    return out_pad[:B, :OUT_DIM]


def _reference(x, w1, b1, w2, b2):
    h = jnp.maximum(x @ w1.T + b1, 0.0)
    return jax.nn.softmax(h @ w2.T + b2, axis=1)


if __name__ == "__main__":
    key = jax.random.PRNGKey(0)
    k_x, k_w1, k_b1, k_w2, k_b2, k_x2 = jax.random.split(key, 6)

    # deterministic init mimicking nn.Linear (uniform +/- 1/sqrt(fan_in))
    bound1 = 1.0 / (IN_DIM ** 0.5)
    w1 = jax.random.uniform(k_w1, (HID_DIM, IN_DIM), jnp.float32, -bound1, bound1)
    b1 = jax.random.uniform(k_b1, (HID_DIM,), jnp.float32, -bound1, bound1)
    bound2 = 1.0 / (HID_DIM ** 0.5)
    w2 = jax.random.uniform(k_w2, (OUT_DIM, HID_DIM), jnp.float32, -bound2, bound2)
    b2 = jax.random.uniform(k_b2, (OUT_DIM,), jnp.float32, -bound2, bound2)

    # pad/transpose the parameters ONCE (hoisted out of the per-call path)
    params = prepare_params(w1, b1, w2, b2)

    # small batch (matches Policy.select_action: a single state at a time)
    B = 2
    x = jax.random.normal(k_x, (B, IN_DIM), jnp.float32)
    probs = jax.block_until_ready(policy_forward(x, *params))
    ref = _reference(x, w1, b1, w2, b2)
    assert probs.shape == (B, OUT_DIM)
    assert jnp.allclose(probs, ref, atol=2e-2, rtol=2e-2), \
        float(jnp.max(jnp.abs(probs - ref)))
    assert jnp.allclose(probs.sum(axis=1), 1.0, atol=1e-5)

    # larger batch to exercise the multi-step (pipelined / megacore) grid path
    B2 = 2048 + 37
    x2 = jax.random.normal(k_x2, (B2, IN_DIM), jnp.float32)
    probs2 = jax.block_until_ready(policy_forward(x2, *params))
    ref2 = _reference(x2, w1, b1, w2, b2)
    assert probs2.shape == (B2, OUT_DIM)
    assert jnp.allclose(probs2, ref2, atol=2e-2, rtol=2e-2), \
        float(jnp.max(jnp.abs(probs2 - ref2)))
    assert jnp.allclose(probs2.sum(axis=1), 1.0, atol=1e-5)

    print("KERNEL_OK")
</pallas_src>

<mosaic_0001>
module attributes {stable_mosaic.version = 11 : i64} {
  func.func @_policy_kernel(%arg0: i32, %arg1: memref<8x8xf32, #tpu.memory_space<vmem>>, %arg2: memref<8x128xf32, #tpu.memory_space<vmem>>, %arg3: memref<1x128xf32, #tpu.memory_space<vmem>>, %arg4: memref<128x8xbf16, #tpu.memory_space<vmem>>, %arg5: memref<1x8xf32, #tpu.memory_space<vmem>>, %arg6: memref<8x8xf32, #tpu.memory_space<vmem>>) attributes {dimension_semantics = [#tpu.dimension_semantics<parallel>], iteration_bounds = array<i64: 1>, scalar_prefetch = 0 : i64, scratch_operands = 0 : i64, tpu.core_type = #tpu.core_type<tc>, window_params = [{transform_indices = @transform_0, window_bounds = array<i64: 8, 8>}, {pipeline_mode = #tpu.pipeline_mode<synchronous>, transform_indices = @transform_1, window_bounds = array<i64: 8, 128>}, {pipeline_mode = #tpu.pipeline_mode<synchronous>, transform_indices = @transform_2, window_bounds = array<i64: 1, 128>}, {pipeline_mode = #tpu.pipeline_mode<synchronous>, transform_indices = @transform_3, window_bounds = array<i64: 128, 8>}, {pipeline_mode = #tpu.pipeline_mode<synchronous>, transform_indices = @transform_4, window_bounds = array<i64: 1, 8>}, {transform_indices = @transform_5, window_bounds = array<i64: 8, 8>}]} {
    %c0 = arith.constant 0 : index
    %c0_0 = arith.constant 0 : index
    %0 = vector.load %arg1[%c0, %c0_0] : memref<8x8xf32, #tpu.memory_space<vmem>>, vector<8x8xf32>
    %c0_1 = arith.constant 0 : index
    %c0_2 = arith.constant 0 : index
    %1 = vector.load %arg2[%c0_1, %c0_2] : memref<8x128xf32, #tpu.memory_space<vmem>>, vector<8x128xf32>
    %c0_3 = arith.constant 0 : index
    %c0_4 = arith.constant 0 : index
    %2 = vector.load %arg3[%c0_3, %c0_4] : memref<1x128xf32, #tpu.memory_space<vmem>>, vector<1x128xf32>
    %3 = vector.extract_strided_slice %0 {offsets = [0, 0], sizes = [8, 1], strides = [1, 1]} : vector<8x8xf32> to vector<8x1xf32>
    %4 = vector.extract_strided_slice %1 {offsets = [0, 0], sizes = [1, 128], strides = [1, 1]} : vector<8x128xf32> to vector<1x128xf32>
    %5 = vector.broadcast %3 : vector<8x1xf32> to vector<8x128xf32>
    %6 = vector.broadcast %4 : vector<1x128xf32> to vector<8x128xf32>
    %7 = arith.mulf %5, %6 : vector<8x128xf32>
    %8 = vector.broadcast %2 : vector<1x128xf32> to vector<8x128xf32>
    %9 = arith.addf %8, %7 : vector<8x128xf32>
    %10 = vector.extract_strided_slice %0 {offsets = [0, 1], sizes = [8, 1], strides = [1, 1]} : vector<8x8xf32> to vector<8x1xf32>
    %11 = vector.extract_strided_slice %1 {offsets = [1, 0], sizes = [1, 128], strides = [1, 1]} : vector<8x128xf32> to vector<1x128xf32>
    %12 = vector.broadcast %10 : vector<8x1xf32> to vector<8x128xf32>
    %13 = vector.broadcast %11 : vector<1x128xf32> to vector<8x128xf32>
    %14 = arith.mulf %12, %13 : vector<8x128xf32>
    %15 = arith.addf %9, %14 : vector<8x128xf32>
    %16 = vector.extract_strided_slice %0 {offsets = [0, 2], sizes = [8, 1], strides = [1, 1]} : vector<8x8xf32> to vector<8x1xf32>
    %17 = vector.extract_strided_slice %1 {offsets = [2, 0], sizes = [1, 128], strides = [1, 1]} : vector<8x128xf32> to vector<1x128xf32>
    %18 = vector.broadcast %16 : vector<8x1xf32> to vector<8x128xf32>
    %19 = vector.broadcast %17 : vector<1x128xf32> to vector<8x128xf32>
    %20 = arith.mulf %18, %19 : vector<8x128xf32>
    %21 = arith.addf %15, %20 : vector<8x128xf32>
    %cst = arith.constant 0.000000e+00 : f32
    %22 = vector.broadcast %cst : f32 to vector<8x128xf32>
    %23 = arith.maximumf %21, %22 : vector<8x128xf32>
    %24 = arith.truncf %23 : vector<8x128xf32> to vector<8x128xbf16>
    %c0_5 = arith.constant 0 : index
    %c0_6 = arith.constant 0 : index
    %25 = vector.load %arg4[%c0_5, %c0_6] : memref<128x8xbf16, #tpu.memory_space<vmem>>, vector<128x8xbf16>
    %cst_7 = arith.constant dense<0.000000e+00> : vector<8x8xf32>
    %26 = tpu.matmul %24, %25, %cst_7 {dimension_numbers = #tpu.dot_dimension_numbers<[1], [0], [0], [1], [0, 0, 1, 1], [], []>} : vector<8x128xbf16>, vector<128x8xbf16>, vector<8x8xf32> -> vector<8x8xf32>
    %c0_8 = arith.constant 0 : index
    %c0_9 = arith.constant 0 : index
    %27 = vector.load %arg5[%c0_8, %c0_9] : memref<1x8xf32, #tpu.memory_space<vmem>>, vector<1x8xf32>
    %28 = vector.broadcast %27 : vector<1x8xf32> to vector<8x8xf32>
    %29 = arith.addf %26, %28 : vector<8x8xf32>
    %30 = vector.extract_strided_slice %29 {offsets = [0, 1], sizes = [8, 1], strides = [1, 1]} : vector<8x8xf32> to vector<8x1xf32>
    %31 = vector.extract_strided_slice %29 {offsets = [0, 0], sizes = [8, 1], strides = [1, 1]} : vector<8x8xf32> to vector<8x1xf32>
    %32 = arith.subf %30, %31 : vector<8x1xf32>
    %33 = math.exp %32 : vector<8x1xf32>
    %cst_10 = arith.constant 1.000000e+00 : f32
    %34 = vector.broadcast %cst_10 : f32 to vector<8x1xf32>
    %35 = arith.addf %34, %33 : vector<8x1xf32>
    %cst_11 = arith.constant 1.000000e+00 : f32
    %36 = vector.broadcast %cst_11 : f32 to vector<8x1xf32>
    %37 = arith.divf %36, %35 : vector<8x1xf32>
    %cst_12 = arith.constant 1.000000e+00 : f32
    %38 = vector.broadcast %cst_12 : f32 to vector<8x1xf32>
    %39 = arith.subf %38, %37 : vector<8x1xf32>
    %40 = tpu.iota {dimensions = array<i32: 1>} : vector<8x8xi32>
    %c0_i32 = arith.constant 0 : i32
    %41 = vector.broadcast %c0_i32 : i32 to vector<8x8xi32>
    %42 = arith.cmpi eq, %40, %41 : vector<8x8xi32>
    %c1_i32 = arith.constant 1 : i32
    %43 = vector.broadcast %c1_i32 : i32 to vector<8x8xi32>
    %44 = arith.cmpi eq, %40, %43 : vector<8x8xi32>
    %cst_13 = arith.constant 0.000000e+00 : f32
    %45 = vector.shape_cast %39 : vector<8x1xf32> to vector<8x1xf32>
    %46 = vector.broadcast %45 : vector<8x1xf32> to vector<8x8xf32>
    %47 = vector.broadcast %cst_13 : f32 to vector<8x8xf32>
    %48 = arith.select %44, %46, %47 : vector<8x8xi1>, vector<8x8xf32>
    %49 = vector.shape_cast %37 : vector<8x1xf32> to vector<8x1xf32>
    %50 = vector.broadcast %49 : vector<8x1xf32> to vector<8x8xf32>
    %51 = arith.select %42, %50, %48 : vector<8x8xi1>, vector<8x8xf32>
    %c0_14 = arith.constant 0 : index
    %c0_15 = arith.constant 0 : index
    %52 = vector.load %arg6[%c0_14, %c0_15] : memref<8x8xf32, #tpu.memory_space<vmem>>, vector<8x8xf32>
    tpu.vector_store %arg6[%c0_14, %c0_15], %51 {strides = array<i32>} : memref<8x8xf32, #tpu.memory_space<vmem>>, vector<8x8xf32>,
    return
  }
  func.func @transform_0(%arg0: i32) -> (i32, i32) {
    %c0_i32 = arith.constant 0 : i32
    %c0_i32_0 = arith.constant 0 : i32
    return %arg0, %c0_i32 : i32, i32
  }
  func.func @transform_1(%arg0: i32) -> (i32, i32) {
    %c0_i32 = arith.constant 0 : i32
    %c0_i32_0 = arith.constant 0 : i32
    %c0_i32_1 = arith.constant 0 : i32
    return %c0_i32, %c0_i32_0 : i32, i32
  }
  func.func @transform_2(%arg0: i32) -> (i32, i32) {
    %c0_i32 = arith.constant 0 : i32
    %c0_i32_0 = arith.constant 0 : i32
    %c0_i32_1 = arith.constant 0 : i32
    return %c0_i32, %c0_i32_0 : i32, i32
  }
  func.func @transform_3(%arg0: i32) -> (i32, i32) {
    %c0_i32 = arith.constant 0 : i32
    %c0_i32_0 = arith.constant 0 : i32
    %c0_i32_1 = arith.constant 0 : i32
    return %c0_i32, %c0_i32_0 : i32, i32
  }
  func.func @transform_4(%arg0: i32) -> (i32, i32) {
    %c0_i32 = arith.constant 0 : i32
    %c0_i32_0 = arith.constant 0 : i32
    %c0_i32_1 = arith.constant 0 : i32
    return %c0_i32, %c0_i32_0 : i32, i32
  }
  func.func @transform_5(%arg0: i32) -> (i32, i32) {
    %c0_i32 = arith.constant 0 : i32
    %c0_i32_0 = arith.constant 0 : i32
    return %arg0, %c0_i32 : i32, i32
  }
}

</mosaic_0001>

<llo_original>
// kernel: policy_forward.1
$region0: #{policy_forward.1}
  #allocation0 [shape = 'u32[]', space=smem, size = 0x4, offset = 0x4, fixed_abs, tag = 'smem constant byte address 0x4 - core index']
  #allocation1 [shape = 'u32[144,128]{1,0:T(1,128)}', space=vmem, size = 0x12000, scoped, tag = 'internal scratch']
  %s0 = inlined_call_operand.vmem [shape: f32[8,8], index: 0, kind: input, shape index: {}]
  %s1 = inlined_call_operand.vmem [shape: f32[8,128], index: 1, kind: input, shape index: {}]
  %s2 = inlined_call_operand.vmem [shape: f32[1,128], index: 2, kind: input, shape index: {}]
  %s3 = inlined_call_operand.vmem [shape: bf16[128,8], index: 3, kind: input, shape index: {}]
  %s4 = inlined_call_operand.vmem [shape: f32[1,8], index: 4, kind: input, shape index: {}]
  %s5 = inlined_call_operand.vmem [shape: f32[8,8], index: 5, kind: output, shape index: {}]
  %s6 = sld [smem:[#allocation0]]
  $region30: #{policy_forward.1} parent=0
    _
  %s8 = ssub.s32 1, %s6
  %s9 = scalar_select 0, %s8, %s6
  // Predicated region
  $region2: #{policy_forward.1} parent=0 // pred_check
    _
  $region3: #{policy_forward.1} parent=0 // pred_check_branch
    %11 = sbr.rel (0) target = $region5
  $region4: #{policy_forward.1} parent=0 // pred_region
    _
  $region5: #{policy_forward.1} parent=0 // pred_fallthru
    _
  // Predicated region
  $region6: #{policy_forward.1} parent=0 // pred_check
    _
  $region7: #{policy_forward.1} parent=0 // pred_check_branch
    %13 = sbr.rel (0) target = $region9
  $region8: #{policy_forward.1} parent=0 // pred_region
    _
  $region9: #{policy_forward.1} parent=0 // pred_fallthru
    _
  // Predicated region
  $region10: #{policy_forward.1} parent=0 // pred_check
    _
  $region11: #{policy_forward.1} parent=0 // pred_check_branch
    %15 = sbr.rel (0) target = $region13
  $region12: #{policy_forward.1} parent=0 // pred_region
    _
  $region13: #{policy_forward.1} parent=0 // pred_fallthru
    _
  // Predicated region
  $region14: #{policy_forward.1} parent=0 // pred_check
    _
  $region15: #{policy_forward.1} parent=0 // pred_check_branch
    %17 = sbr.rel (0) target = $region17
  $region16: #{policy_forward.1} parent=0 // pred_region
    _
  $region17: #{policy_forward.1} parent=0 // pred_fallthru
    _
  // Predicated region
  $region18: #{policy_forward.1} parent=0 // pred_check
    _
  $region19: #{policy_forward.1} parent=0 // pred_check_branch
    %19 = sbr.rel (0) target = $region21
  $region20: #{policy_forward.1} parent=0 // pred_region
    _
  $region21: #{policy_forward.1} parent=0 // pred_fallthru
    _
  %v21 = vld [vmem:[%s0] sm:$0xff]
  %v22 = vld [vmem:[%s1] sm:$0xff]
  %v23 = vld [vmem:[%s2] sm:$0x1]
  %25 = vset.pattern.permute.xlu0 0
  %26 = vperm.xlu0 %25, %v21
  %v27 = vpop.permute.xlu0 %26
  %v29 = vlaneseq
  %v30 = vshrl.u32 %v29, 7
  %v31 = vsub.s32 0, %v30
  %v32 = vrot.slane %v22, %v31
  %v33 = vmul.f32 %v27, %v32
  %v35 = vlaneseq
  %v36 = vshrl.u32 %v35, 7
  %v37 = vsub.s32 0, %v36
  %v38 = vrot.slane %v23, %v37
  %v40 = vadd.f32 %v38, %v33
  %41 = vset.pattern.permute.xlu0 1
  %42 = vperm.xlu0 %41, %v21
  %v43 = vpop.permute.xlu0 %42
  %v45 = vlaneseq
  %v46 = vshrl.u32 %v45, 7
  %v47 = vsub.s32 1, %v46
  %v48 = vrot.slane %v22, %v47
  %v49 = vmul.f32 %v43, %v48
  %v50 = vadd.f32 %v40, %v49
  %51 = vset.pattern.permute.xlu0 2
  %52 = vperm.xlu0 %51, %v21
  %v53 = vpop.permute.xlu0 %52
  %v55 = vlaneseq
  %v56 = vshrl.u32 %v55, 7
  %v57 = vsub.s32 2, %v56
  %v58 = vrot.slane %v22, %v57
  %v59 = vmul.f32 %v53, %v58
  %v60 = vadd.f32 %v50, %v59
  %v61 = vmax.f32 %v60, 0.0
  %v62 = vpack.c.bf16 %v61, %v61
  %v63 = vld [vmem:[%s3] sm:$0xf]
  %v64 = vld [vmem:[%s3 + $0x4] sm:$0xf]
  %v65 = vld [vmem:[%s3 + $0x8] sm:$0xf]
  %v66 = vld [vmem:[%s3 + $0xc] sm:$0xf]
  %v67 = vld [vmem:[%s3 + $0x10] sm:$0xf]
  %v68 = vld [vmem:[%s3 + $0x14] sm:$0xf]
  %v69 = vld [vmem:[%s3 + $0x18] sm:$0xf]
  %v70 = vld [vmem:[%s3 + $0x1c] sm:$0xf]
  %v71 = vld [vmem:[%s3 + $0x20] sm:$0xf]
  %v72 = vld [vmem:[%s3 + $0x24] sm:$0xf]
  %v73 = vld [vmem:[%s3 + $0x28] sm:$0xf]
  %v74 = vld [vmem:[%s3 + $0x2c] sm:$0xf]
  %v75 = vld [vmem:[%s3 + $0x30] sm:$0xf]
  %v76 = vld [vmem:[%s3 + $0x34] sm:$0xf]
  %v77 = vld [vmem:[%s3 + $0x38] sm:$0xf]
  %v78 = vld [vmem:[%s3 + $0x3c] sm:$0xf]
  %v79 = vld [vmem:[%s4] sm:$0x1]
  %v81 = vlaneseq
  %v82 = vshrl.u32 %v81, 7
  %v83 = vsub.s32 0, %v82
  %v84 = vrot.slane %v79, %v83
  %v102 = vunpack.c.l.b16 %v63
  %v103 = vunpack.c.l.b16 %v64
  %v104 = vunpack.c.l.b16 %v65
  %v105 = vunpack.c.l.b16 %v66
  %v106 = vunpack.c.l.b16 %v67
  %v107 = vunpack.c.l.b16 %v68
  %v108 = vunpack.c.l.b16 %v69
  %v109 = vunpack.c.l.b16 %v70
  %v110 = vunpack.c.l.b16 %v71
  %v111 = vunpack.c.l.b16 %v72
  %v112 = vunpack.c.l.b16 %v73
  %v113 = vunpack.c.l.b16 %v74
  %v114 = vunpack.c.l.b16 %v75
  %v115 = vunpack.c.l.b16 %v76
  %v116 = vunpack.c.l.b16 %v77
  %v117 = vunpack.c.l.b16 %v78
  %v118 = vpack.c.b16 %v103, %v102
  %v119 = vpack.c.b16 %v105, %v104
  %v120 = vpack.c.b16 %v107, %v106
  %v121 = vpack.c.b16 %v109, %v108
  %v122 = vpack.c.b16 %v111, %v110
  %v123 = vpack.c.b16 %v113, %v112
  %v124 = vpack.c.b16 %v115, %v114
  %v125 = vpack.c.b16 %v117, %v116
  %134 = vmatprep.subr.bf16.mxu0 0
  %135 = vmatpush1.bf16.msra.mxu0 %v125
  %136 = vmatprep.subr.bf16.mxu0 0
  %137 = vmatpush1.bf16.msra.mxu0 %v124
  %138 = vmatprep.subr.bf16.mxu0 0
  %139 = vmatpush1.bf16.msra.mxu0 %v123
  %140 = vmatprep.subr.bf16.mxu0 0
  %141 = vmatpush1.bf16.msra.mxu0 %v122
  %142 = vmatprep.subr.bf16.mxu0 0
  %143 = vmatpush1.bf16.msra.mxu0 %v121
  %144 = vmatprep.subr.bf16.mxu0 0
  %145 = vmatpush1.bf16.msra.mxu0 %v120
  %146 = vmatprep.subr.bf16.mxu0 0
  %147 = vmatpush1.bf16.msra.mxu0 %v119
  %148 = vmatprep.subr.bf16.mxu0 0
  %149 = vmatpush1.bf16.msra.mxu0 %v118
  %150 = vmatprep.subr.bf16.mxu0 0
  %151 = vmatpush2.bf16.msra.mxu0 0
  %152 = vmatprep.subr.bf16.mxu0 0
  %153 = vmatpush2.bf16.msra.mxu0 0
  %154 = vmatprep.subr.bf16.mxu0 0
  %155 = vmatpush2.bf16.msra.mxu0 0
  %156 = vmatprep.subr.bf16.mxu0 0
  %157 = vmatpush2.bf16.msra.mxu0 0
  %158 = vmatprep.subr.bf16.mxu0 0
  %159 = vmatpush2.bf16.msra.mxu0 0
  %160 = vmatprep.subr.bf16.mxu0 0
  %161 = vmatpush2.bf16.msra.mxu0 0
  %162 = vmatprep.subr.bf16.mxu0 0
  %163 = vmatpush2.bf16.msra.mxu0 0
  %164 = vmatprep.subr.bf16.mxu0 0
  %165 = vmatpush2.bf16.msra.mxu0 0
  %166 = vmatprep.mubr.bf16.mxu0 0
  %167 = vmatmul.mubr.bf16.gmra.mxu0 %v62
  %v168 = vpop.f32.mrf.mxu0
  %v169 = vadd.f32 %v84, %v168
  %v170 = vpop.f32.mrf.mxu0
  %v171 = vpop.f32.mrf.mxu0
  %v172 = vpop.f32.mrf.mxu0
  %173 = vdwg.mxu0
  %175 = vrot.lane.b32.xlu0 %v169, 1
  %v176 = vpop.permute.xlu0 %175
  %v178 = vsub.f32 %v169, %v176
  %v179 = vmul.f32 %v178, 1.442695
  %v180 = vpow.pop %v179
  %v181 = vadd.f32 %v180, 1.0
  %v182 = vrcp.pop %v181
  %v183 = vmul.f32 1.0, %v182
  %v184 = vsub.f32 1.0, %v183
  %v185 = vlaneseq
  %v186 = vand.u32 %v185, 127
  %vm187 = vcmp.eq.s32.totalorder %v186, 0
  %vm188 = vcmp.eq.s32.totalorder %v186, 1
  %190 = vset.pattern.permute.xlu0 1
  %191 = vperm.xlu0 %190, %v184
  %v192 = vpop.permute.xlu0 %191
  %v194 = vsel %vm188, %v192, 0.0
  %196 = vset.pattern.permute.xlu0 1
  %197 = vperm.xlu0 %196, %v183
  %v198 = vpop.permute.xlu0 %197
  %v200 = vsel %vm187, %v198, %v194
  %vm201 = vcmask 64512
  %202 = vst.msk [vmem:[%s5] sm:$0xff] %vm201, %v200
  // Predicated region
  $region22: #{policy_forward.1} parent=0 // pred_check
    _
  $region23: #{policy_forward.1} parent=0 // pred_check_branch
    %204 = sbr.rel (0) target = $region25
  $region24: #{policy_forward.1} parent=0 // pred_region
    _
  $region25: #{policy_forward.1} parent=0 // pred_fallthru
    _
  // Predicated region
  $region26: #{policy_forward.1} parent=0 // pred_check
    _
  $region27: #{policy_forward.1} parent=0 // pred_check_branch
    %206 = sbr.rel (0) target = $region29
  $region28: #{policy_forward.1} parent=0 // pred_region
    _
  $region29: #{policy_forward.1} parent=0 // pred_fallthru
    _

</llo_original>
